<compile_context>
chip_gen: v5e
topology: v5e:2x2
jax: 0.10.0
libtpu: 0.0.40
codegen_flags: <defaults>
</compile_context>

<pallas_src>
import functools

import jax
import jax.numpy as jnp
from jax.experimental import pallas as pl
from jax.experimental.pallas import tpu as pltpu


def _round_up(x, m):
    return (x + m - 1) // m * m


def _choose_tile_m(n):
    """Batch tile: multiple of 16 (bf16 sublane pack), capped at 128 (MXU M dim).

    Padded batches >= 64 are split into >= 2 grid steps so the "parallel" grid
    axis can be sharded across both v7x TensorCores; tiny batches stay a single
    tile (per-grid-step overhead would outweigh the split).
    """
    npad16 = max(16, _round_up(n, 16))
    if npad16 > 256:
        return 128                               # grid >= 3
    if npad16 >= 64:
        return _round_up((npad16 + 1) // 2, 16)  # grid == 2
    return npad16                                # tiny batch: one tile


def vae_kernel(x_ref, eps_ref,
               w1_ref, b1_ref,
               w_enc_ref, b_enc_ref,     # fused [w21 || w22] (each head 128-padded)
               w3_ref, b3_ref,
               w4_ref, b4_ref,
               recon_ref, zml_ref,
               *, h2p):
    # cast on the VPU (free under the MXU) instead of a wrapper-side XLA pass
    x = x_ref[...].astype(jnp.bfloat16)                    # (TM, F)

    # ---------------- encoder ----------------
    h1 = jnp.dot(x, w1_ref[...], preferred_element_type=jnp.float32) + b1_ref[...]
    h1 = jnp.maximum(h1, 0.0)                              # F.relu (f32)
    enc = jnp.dot(h1.astype(jnp.bfloat16), w_enc_ref[...],
                  preferred_element_type=jnp.float32) + b_enc_ref[...]
    mu = enc[:, :h2p]                                      # 128-aligned slice
    logvar = enc[:, h2p:]                                  # 128-aligned slice

    # ---------------- reparametrize ----------------
    std = jnp.exp(0.5 * logvar)                            # f32 (EUP)
    z = eps_ref[...] * std + mu                            # f32 (VPU)

    # ---------------- decoder ----------------
    h3 = jnp.dot(z.astype(jnp.bfloat16), w3_ref[...],
                 preferred_element_type=jnp.float32) + b3_ref[...]
    h3 = jnp.maximum(h3, 0.0)                              # F.relu (f32)
    recon = jnp.tanh(
        jnp.dot(h3.astype(jnp.bfloat16), w4_ref[...],
                preferred_element_type=jnp.float32) + b4_ref[...]
    )                                                      # F.tanh (f32)

    # ---------------- lane-dense, tile-aligned stores ----------------
    recon_ref[...] = recon.astype(recon_ref.dtype)         # (TM, F)
    zml_ref[:, :h2p] = z                                   # three 128-aligned
    zml_ref[:, h2p:2 * h2p] = mu                           # slab stores, no
    zml_ref[:, 2 * h2p:] = logvar                          # cross-lane packing


def init_params(key, features_dim, hidden_dim1, hidden_dim2):
    """PyTorch-convention Linear init: U(-1/sqrt(fan_in), 1/sqrt(fan_in)).

    Weights stored as (out, in), biases as (out,) — same layout as nn.Linear.
    """
    def linear(k, out_dim, in_dim):
        kw, kb = jax.random.split(k)
        bound = 1.0 / jnp.sqrt(in_dim)
        w = jax.random.uniform(kw, (out_dim, in_dim), jnp.float32, -bound, bound)
        b = jax.random.uniform(kb, (out_dim,), jnp.float32, -bound, bound)
        return w, b

    k1, k21, k22, k3, k4 = jax.random.split(key, 5)
    w1, b1 = linear(k1, hidden_dim1, features_dim)
    w21, b21 = linear(k21, hidden_dim2, hidden_dim1)
    w22, b22 = linear(k22, hidden_dim2, hidden_dim1)
    w3, b3 = linear(k3, hidden_dim1, hidden_dim2)
    w4, b4 = linear(k4, features_dim, hidden_dim1)
    return {"w1": w1, "b1": b1, "w21": w21, "b21": b21,
            "w22": w22, "b22": b22, "w3": w3, "b3": b3,
            "w4": w4, "b4": b4}


def prepare_params(params):
    """One-time conversion to kernel layout.

    Weights become (in, out) bf16 with the hidden dims zero-padded to 128-lane
    multiples (H1 -> H1P, H2 -> H2P); biases become (1, out) f32, zero-padded.
    The mu/logvar heads are fused as [mu-head(H2P) || logvar-head(H2P)] so the
    in-kernel slices are tile-aligned. Zero padding keeps the math identical to
    the unpadded model. Call ONCE and reuse — keeps transposes/casts/pads out of
    the per-call path.
    """
    bf, f32 = jnp.bfloat16, jnp.float32
    H1, F = params["w1"].shape
    H2 = params["w21"].shape[0]
    H1P = _round_up(H1, 128)
    H2P = _round_up(H2, 128)

    w1 = jnp.pad(params["w1"].T, ((0, 0), (0, H1P - H1))).astype(bf)          # (F, H1P)
    b1 = jnp.pad(params["b1"], (0, H1P - H1)).reshape(1, -1).astype(f32)

    w21 = jnp.pad(params["w21"].T, ((0, H1P - H1), (0, H2P - H2)))            # (H1P, H2P)
    w22 = jnp.pad(params["w22"].T, ((0, H1P - H1), (0, H2P - H2)))
    w_enc = jnp.concatenate([w21, w22], axis=1).astype(bf)                    # (H1P, 2*H2P)
    b_enc = jnp.concatenate([jnp.pad(params["b21"], (0, H2P - H2)),
                             jnp.pad(params["b22"], (0, H2P - H2))]
                            ).reshape(1, -1).astype(f32)

    w3 = jnp.pad(params["w3"].T, ((0, H2P - H2), (0, H1P - H1))).astype(bf)   # (H2P, H1P)
    b3 = jnp.pad(params["b3"], (0, H1P - H1)).reshape(1, -1).astype(f32)

    w4 = jnp.pad(params["w4"].T, ((0, H1P - H1), (0, 0))).astype(bf)          # (H1P, F)
    b4 = params["b4"].reshape(1, -1).astype(f32)

    return {"w1": w1, "b1": b1, "w_enc": w_enc, "b_enc": b_enc,
            "w3": w3, "b3": b3, "w4": w4, "b4": b4}


@functools.partial(jax.jit, static_argnames=("recon_dtype",))
def vae_forward(x, eps, kp, *, recon_dtype=jnp.float32):
    """x: (N, F), eps: (N, H2) ~ N(0,1), kp: output of prepare_params()."""
    N, F = x.shape
    H2 = eps.shape[1]
    H1P = kp["w1"].shape[1]
    H2P = kp["w_enc"].shape[1] // 2
    ZML_W = 3 * H2P                     # lane-dense z | mu | logvar slab (128-aligned)

    TM = _choose_tile_m(N)
    Npad = _round_up(N, TM)
    grid = (Npad // TM,)

    # pad only when needed (each wrapper pad is an extra HBM pass)
    x_p = x.astype(jnp.float32)
    if Npad != N:
        x_p = jnp.pad(x_p, ((0, Npad - N), (0, 0)))
    eps_p = eps.astype(jnp.float32)
    if Npad != N or H2P != H2:
        eps_p = jnp.pad(eps_p, ((0, Npad - N), (0, H2P - H2)))

    in_specs = [
        pl.BlockSpec((TM, F), lambda i: (i, 0)),         # x      (batch-tiled, f32)
        pl.BlockSpec((TM, H2P), lambda i: (i, 0)),       # eps    (batch-tiled)
        pl.BlockSpec((F, H1P), lambda i: (0, 0)),        # w1     (VMEM-resident)
        pl.BlockSpec((1, H1P), lambda i: (0, 0)),        # b1
        pl.BlockSpec((H1P, 2 * H2P), lambda i: (0, 0)),  # w_enc
        pl.BlockSpec((1, 2 * H2P), lambda i: (0, 0)),    # b_enc
        pl.BlockSpec((H2P, H1P), lambda i: (0, 0)),      # w3
        pl.BlockSpec((1, H1P), lambda i: (0, 0)),        # b3
        pl.BlockSpec((H1P, F), lambda i: (0, 0)),        # w4
        pl.BlockSpec((1, F), lambda i: (0, 0)),          # b4
    ]
    out_specs = (
        pl.BlockSpec((TM, F), lambda i: (i, 0)),         # reconstructions
        pl.BlockSpec((TM, ZML_W), lambda i: (i, 0)),     # z | mu | logvar slabs
    )
    out_shape = (
        jax.ShapeDtypeStruct((Npad, F), recon_dtype),
        jax.ShapeDtypeStruct((Npad, ZML_W), jnp.float32),
    )

    weight_bytes = 2 * (F * H1P + H1P * 2 * H2P + H2P * H1P + H1P * F)   # bf16
    bias_bytes = 4 * (2 * H1P + 2 * H2P + F)
    recon_bytes = Npad * F * jnp.dtype(recon_dtype).itemsize
    cost = pl.CostEstimate(
        flops=2 * Npad * (F * H1P + H1P * 2 * H2P + H2P * H1P + H1P * F),
        transcendentals=Npad * (H2P + F),                                # exp + tanh
        bytes_accessed=(4 * Npad * F + 4 * Npad * H2P                    # x, eps
                        + weight_bytes + bias_bytes
                        + recon_bytes + 4 * Npad * ZML_W),               # outputs
    )

    recon_p, zml_p = pl.pallas_call(
        functools.partial(vae_kernel, h2p=H2P),
        out_shape=out_shape,
        grid_spec=pltpu.PrefetchScalarGridSpec(
            num_scalar_prefetch=0,
            grid=grid,
            in_specs=in_specs,
            out_specs=out_specs,
        ),
        compiler_params=pltpu.CompilerParams(
            dimension_semantics=("parallel",),   # batch axis -> both TCs on v7x
        ),
        cost_estimate=cost,
    )(x_p, eps_p, kp["w1"], kp["b1"], kp["w_enc"], kp["b_enc"],
      kp["w3"], kp["b3"], kp["w4"], kp["b4"])

    recon = recon_p if Npad == N else recon_p[:N]
    z = zml_p[:N, :H2]
    mu = zml_p[:N, H2P:H2P + H2]
    logvar = zml_p[:N, 2 * H2P:2 * H2P + H2]
    return recon, z, mu, logvar


if __name__ == "__main__":
    # small shapes consistent with the module's forward
    BATCH, FEATURES, HIDDEN1, HIDDEN2 = 8, 128, 64, 32

    key = jax.random.PRNGKey(0)
    k_x, k_eps, k_p = jax.random.split(key, 3)

    x = jax.random.normal(k_x, (BATCH, FEATURES), jnp.float32)
    eps = jax.random.normal(k_eps, (BATCH, HIDDEN2), jnp.float32)
    params = init_params(k_p, FEATURES, HIDDEN1, HIDDEN2)
    kparams = prepare_params(params)   # one-time layout/pad/dtype conversion

    recon, z, mu, logvar = vae_forward(x, eps, kparams)
    jax.block_until_ready((recon, z, mu, logvar))

    # ---- reference #1: mirrors the kernel's bf16-operand / f32-accumulate math
    bf = jnp.bfloat16
    xb = x.astype(bf)
    h1 = jnp.maximum(
        jnp.dot(xb, params["w1"].T.astype(bf), preferred_element_type=jnp.float32)
        + params["b1"], 0.0)
    h1b = h1.astype(bf)
    mu_r = jnp.dot(h1b, params["w21"].T.astype(bf),
                   preferred_element_type=jnp.float32) + params["b21"]
    lv_r = jnp.dot(h1b, params["w22"].T.astype(bf),
                   preferred_element_type=jnp.float32) + params["b22"]
    z_r = eps * jnp.exp(0.5 * lv_r) + mu_r
    h3 = jnp.maximum(
        jnp.dot(z_r.astype(bf), params["w3"].T.astype(bf),
                preferred_element_type=jnp.float32) + params["b3"], 0.0)
    recon_r = jnp.tanh(
        jnp.dot(h3.astype(bf), params["w4"].T.astype(bf),
                preferred_element_type=jnp.float32) + params["b4"])

    assert jnp.allclose(mu, mu_r, atol=1e-2), "mu mismatch (bf16 ref)"
    assert jnp.allclose(logvar, lv_r, atol=1e-2), "logvar mismatch (bf16 ref)"
    assert jnp.allclose(z, z_r, atol=1e-2), "z mismatch (bf16 ref)"
    assert jnp.allclose(recon, recon_r, atol=1e-2), "recon mismatch (bf16 ref)"

    # ---- reference #2: pure f32 PyTorch-equivalent math (loose tolerance for bf16 operands)
    h1f = jnp.maximum(x @ params["w1"].T + params["b1"], 0.0)
    mu_f = h1f @ params["w21"].T + params["b21"]
    lv_f = h1f @ params["w22"].T + params["b22"]
    z_f = eps * jnp.exp(0.5 * lv_f) + mu_f
    h3f = jnp.maximum(z_f @ params["w3"].T + params["b3"], 0.0)
    recon_f = jnp.tanh(h3f @ params["w4"].T + params["b4"])

    assert jnp.allclose(mu, mu_f, atol=5e-2), "mu mismatch (f32 ref)"
    assert jnp.allclose(logvar, lv_f, atol=5e-2), "logvar mismatch (f32 ref)"
    assert jnp.allclose(z, z_f, atol=5e-2), "z mismatch (f32 ref)"
    assert jnp.allclose(recon, recon_f, atol=5e-2), "recon mismatch (f32 ref)"

    print("KERNEL_OK")
</pallas_src>

<mosaic_0001>
module attributes {stable_mosaic.version = 11 : i64} {
  func.func @vae_kernel(%arg0: i32, %arg1: memref<16x128xf32, #tpu.memory_space<vmem>>, %arg2: memref<16x128xf32, #tpu.memory_space<vmem>>, %arg3: memref<128x128xbf16, #tpu.memory_space<vmem>>, %arg4: memref<1x128xf32, #tpu.memory_space<vmem>>, %arg5: memref<128x256xbf16, #tpu.memory_space<vmem>>, %arg6: memref<1x256xf32, #tpu.memory_space<vmem>>, %arg7: memref<128x128xbf16, #tpu.memory_space<vmem>>, %arg8: memref<1x128xf32, #tpu.memory_space<vmem>>, %arg9: memref<128x128xbf16, #tpu.memory_space<vmem>>, %arg10: memref<1x128xf32, #tpu.memory_space<vmem>>, %arg11: memref<16x128xf32, #tpu.memory_space<vmem>>, %arg12: memref<16x384xf32, #tpu.memory_space<vmem>>) attributes {dimension_semantics = [#tpu.dimension_semantics<parallel>], iteration_bounds = array<i64: 1>, scalar_prefetch = 0 : i64, scratch_operands = 0 : i64, tpu.core_type = #tpu.core_type<tc>, window_params = [{transform_indices = @transform_0, window_bounds = array<i64: 16, 128>}, {transform_indices = @transform_1, window_bounds = array<i64: 16, 128>}, {pipeline_mode = #tpu.pipeline_mode<synchronous>, transform_indices = @transform_2, window_bounds = array<i64: 128, 128>}, {pipeline_mode = #tpu.pipeline_mode<synchronous>, transform_indices = @transform_3, window_bounds = array<i64: 1, 128>}, {pipeline_mode = #tpu.pipeline_mode<synchronous>, transform_indices = @transform_4, window_bounds = array<i64: 128, 256>}, {pipeline_mode = #tpu.pipeline_mode<synchronous>, transform_indices = @transform_5, window_bounds = array<i64: 1, 256>}, {pipeline_mode = #tpu.pipeline_mode<synchronous>, transform_indices = @transform_6, window_bounds = array<i64: 128, 128>}, {pipeline_mode = #tpu.pipeline_mode<synchronous>, transform_indices = @transform_7, window_bounds = array<i64: 1, 128>}, {pipeline_mode = #tpu.pipeline_mode<synchronous>, transform_indices = @transform_8, window_bounds = array<i64: 128, 128>}, {pipeline_mode = #tpu.pipeline_mode<synchronous>, transform_indices = @transform_9, window_bounds = array<i64: 1, 128>}, {transform_indices = @transform_10, window_bounds = array<i64: 16, 128>}, {transform_indices = @transform_11, window_bounds = array<i64: 16, 384>}]} {
    %c0 = arith.constant 0 : index
    %c0_0 = arith.constant 0 : index
    %0 = vector.load %arg1[%c0, %c0_0] : memref<16x128xf32, #tpu.memory_space<vmem>>, vector<16x128xf32>
    %1 = arith.truncf %0 : vector<16x128xf32> to vector<16x128xbf16>
    %c0_1 = arith.constant 0 : index
    %c0_2 = arith.constant 0 : index
    %2 = vector.load %arg3[%c0_1, %c0_2] : memref<128x128xbf16, #tpu.memory_space<vmem>>, vector<128x128xbf16>
    %cst = arith.constant dense<0.000000e+00> : vector<16x128xf32>
    %3 = tpu.matmul %1, %2, %cst {dimension_numbers = #tpu.dot_dimension_numbers<[1], [0], [0], [1], [0, 0, 1, 1], [], []>} : vector<16x128xbf16>, vector<128x128xbf16>, vector<16x128xf32> -> vector<16x128xf32>
    %c0_3 = arith.constant 0 : index
    %c0_4 = arith.constant 0 : index
    %4 = vector.load %arg4[%c0_3, %c0_4] : memref<1x128xf32, #tpu.memory_space<vmem>>, vector<1x128xf32>
    %5 = vector.broadcast %4 : vector<1x128xf32> to vector<16x128xf32>
    %6 = arith.addf %3, %5 : vector<16x128xf32>
    %cst_5 = arith.constant 0.000000e+00 : f32
    %7 = vector.broadcast %cst_5 : f32 to vector<16x128xf32>
    %8 = arith.maximumf %6, %7 : vector<16x128xf32>
    %9 = arith.truncf %8 : vector<16x128xf32> to vector<16x128xbf16>
    %c0_6 = arith.constant 0 : index
    %c0_7 = arith.constant 0 : index
    %10 = vector.load %arg5[%c0_6, %c0_7] : memref<128x256xbf16, #tpu.memory_space<vmem>>, vector<128x256xbf16>
    %cst_8 = arith.constant dense<0.000000e+00> : vector<16x256xf32>
    %11 = tpu.matmul %9, %10, %cst_8 {dimension_numbers = #tpu.dot_dimension_numbers<[1], [0], [0], [1], [0, 0, 1, 1], [], []>} : vector<16x128xbf16>, vector<128x256xbf16>, vector<16x256xf32> -> vector<16x256xf32>
    %c0_9 = arith.constant 0 : index
    %c0_10 = arith.constant 0 : index
    %12 = vector.load %arg6[%c0_9, %c0_10] : memref<1x256xf32, #tpu.memory_space<vmem>>, vector<1x256xf32>
    %13 = vector.broadcast %12 : vector<1x256xf32> to vector<16x256xf32>
    %14 = arith.addf %11, %13 : vector<16x256xf32>
    %15 = vector.extract_strided_slice %14 {offsets = [0, 0], sizes = [16, 128], strides = [1, 1]} : vector<16x256xf32> to vector<16x128xf32>
    %16 = vector.extract_strided_slice %14 {offsets = [0, 128], sizes = [16, 128], strides = [1, 1]} : vector<16x256xf32> to vector<16x128xf32>
    %cst_11 = arith.constant 5.000000e-01 : f32
    %17 = vector.broadcast %cst_11 : f32 to vector<16x128xf32>
    %18 = arith.mulf %17, %16 : vector<16x128xf32>
    %19 = math.exp %18 : vector<16x128xf32>
    %c0_12 = arith.constant 0 : index
    %c0_13 = arith.constant 0 : index
    %20 = vector.load %arg2[%c0_12, %c0_13] : memref<16x128xf32, #tpu.memory_space<vmem>>, vector<16x128xf32>
    %21 = arith.mulf %20, %19 : vector<16x128xf32>
    %22 = arith.addf %21, %15 : vector<16x128xf32>
    %23 = arith.truncf %22 : vector<16x128xf32> to vector<16x128xbf16>
    %c0_14 = arith.constant 0 : index
    %c0_15 = arith.constant 0 : index
    %24 = vector.load %arg7[%c0_14, %c0_15] : memref<128x128xbf16, #tpu.memory_space<vmem>>, vector<128x128xbf16>
    %cst_16 = arith.constant dense<0.000000e+00> : vector<16x128xf32>
    %25 = tpu.matmul %23, %24, %cst_16 {dimension_numbers = #tpu.dot_dimension_numbers<[1], [0], [0], [1], [0, 0, 1, 1], [], []>} : vector<16x128xbf16>, vector<128x128xbf16>, vector<16x128xf32> -> vector<16x128xf32>
    %c0_17 = arith.constant 0 : index
    %c0_18 = arith.constant 0 : index
    %26 = vector.load %arg8[%c0_17, %c0_18] : memref<1x128xf32, #tpu.memory_space<vmem>>, vector<1x128xf32>
    %27 = vector.broadcast %26 : vector<1x128xf32> to vector<16x128xf32>
    %28 = arith.addf %25, %27 : vector<16x128xf32>
    %cst_19 = arith.constant 0.000000e+00 : f32
    %29 = vector.broadcast %cst_19 : f32 to vector<16x128xf32>
    %30 = arith.maximumf %28, %29 : vector<16x128xf32>
    %31 = arith.truncf %30 : vector<16x128xf32> to vector<16x128xbf16>
    %c0_20 = arith.constant 0 : index
    %c0_21 = arith.constant 0 : index
    %32 = vector.load %arg9[%c0_20, %c0_21] : memref<128x128xbf16, #tpu.memory_space<vmem>>, vector<128x128xbf16>
    %cst_22 = arith.constant dense<0.000000e+00> : vector<16x128xf32>
    %33 = tpu.matmul %31, %32, %cst_22 {dimension_numbers = #tpu.dot_dimension_numbers<[1], [0], [0], [1], [0, 0, 1, 1], [], []>} : vector<16x128xbf16>, vector<128x128xbf16>, vector<16x128xf32> -> vector<16x128xf32>
    %c0_23 = arith.constant 0 : index
    %c0_24 = arith.constant 0 : index
    %34 = vector.load %arg10[%c0_23, %c0_24] : memref<1x128xf32, #tpu.memory_space<vmem>>, vector<1x128xf32>
    %35 = vector.broadcast %34 : vector<1x128xf32> to vector<16x128xf32>
    %36 = arith.addf %33, %35 : vector<16x128xf32>
    %37 = math.tanh %36 : vector<16x128xf32>
    %c0_25 = arith.constant 0 : index
    %c0_26 = arith.constant 0 : index
    %38 = vector.load %arg11[%c0_25, %c0_26] : memref<16x128xf32, #tpu.memory_space<vmem>>, vector<16x128xf32>
    tpu.vector_store %arg11[%c0_25, %c0_26], %37 {strides = array<i32>} : memref<16x128xf32, #tpu.memory_space<vmem>>, vector<16x128xf32>,
    %c0_27 = arith.constant 0 : index
    %c0_28 = arith.constant 0 : index
    %39 = vector.load %arg12[%c0_27, %c0_28] : memref<16x384xf32, #tpu.memory_space<vmem>>, vector<16x128xf32>
    tpu.vector_store %arg12[%c0_27, %c0_28], %22 {strides = array<i32>} : memref<16x384xf32, #tpu.memory_space<vmem>>, vector<16x128xf32>,
    %c0_29 = arith.constant 0 : index
    %c128 = arith.constant 128 : index
    %40 = vector.load %arg12[%c0_29, %c128] : memref<16x384xf32, #tpu.memory_space<vmem>>, vector<16x128xf32>
    tpu.vector_store %arg12[%c0_29, %c128], %15 {strides = array<i32>} : memref<16x384xf32, #tpu.memory_space<vmem>>, vector<16x128xf32>,
    %c0_30 = arith.constant 0 : index
    %c256 = arith.constant 256 : index
    %41 = vector.load %arg12[%c0_30, %c256] : memref<16x384xf32, #tpu.memory_space<vmem>>, vector<16x128xf32>
    tpu.vector_store %arg12[%c0_30, %c256], %16 {strides = array<i32>} : memref<16x384xf32, #tpu.memory_space<vmem>>, vector<16x128xf32>,
    return
  }
  func.func @transform_0(%arg0: i32) -> (i32, i32) {
    %c0_i32 = arith.constant 0 : i32
    %c0_i32_0 = arith.constant 0 : i32
    return %arg0, %c0_i32 : i32, i32
  }
  func.func @transform_1(%arg0: i32) -> (i32, i32) {
    %c0_i32 = arith.constant 0 : i32
    %c0_i32_0 = arith.constant 0 : i32
    return %arg0, %c0_i32 : i32, i32
  }
  func.func @transform_2(%arg0: i32) -> (i32, i32) {
    %c0_i32 = arith.constant 0 : i32
    %c0_i32_0 = arith.constant 0 : i32
    %c0_i32_1 = arith.constant 0 : i32
    return %c0_i32, %c0_i32_0 : i32, i32
  }
  func.func @transform_3(%arg0: i32) -> (i32, i32) {
    %c0_i32 = arith.constant 0 : i32
    %c0_i32_0 = arith.constant 0 : i32
    %c0_i32_1 = arith.constant 0 : i32
    return %c0_i32, %c0_i32_0 : i32, i32
  }
  func.func @transform_4(%arg0: i32) -> (i32, i32) {
    %c0_i32 = arith.constant 0 : i32
    %c0_i32_0 = arith.constant 0 : i32
    %c0_i32_1 = arith.constant 0 : i32
    return %c0_i32, %c0_i32_0 : i32, i32
  }
  func.func @transform_5(%arg0: i32) -> (i32, i32) {
    %c0_i32 = arith.constant 0 : i32
    %c0_i32_0 = arith.constant 0 : i32
    %c0_i32_1 = arith.constant 0 : i32
    return %c0_i32, %c0_i32_0 : i32, i32
  }
  func.func @transform_6(%arg0: i32) -> (i32, i32) {
    %c0_i32 = arith.constant 0 : i32
    %c0_i32_0 = arith.constant 0 : i32
    %c0_i32_1 = arith.constant 0 : i32
    return %c0_i32, %c0_i32_0 : i32, i32
  }
  func.func @transform_7(%arg0: i32) -> (i32, i32) {
    %c0_i32 = arith.constant 0 : i32
    %c0_i32_0 = arith.constant 0 : i32
    %c0_i32_1 = arith.constant 0 : i32
    return %c0_i32, %c0_i32_0 : i32, i32
  }
  func.func @transform_8(%arg0: i32) -> (i32, i32) {
    %c0_i32 = arith.constant 0 : i32
    %c0_i32_0 = arith.constant 0 : i32
    %c0_i32_1 = arith.constant 0 : i32
    return %c0_i32, %c0_i32_0 : i32, i32
  }
  func.func @transform_9(%arg0: i32) -> (i32, i32) {
    %c0_i32 = arith.constant 0 : i32
    %c0_i32_0 = arith.constant 0 : i32
    %c0_i32_1 = arith.constant 0 : i32
    return %c0_i32, %c0_i32_0 : i32, i32
  }
  func.func @transform_10(%arg0: i32) -> (i32, i32) {
    %c0_i32 = arith.constant 0 : i32
    %c0_i32_0 = arith.constant 0 : i32
    return %arg0, %c0_i32 : i32, i32
  }
  func.func @transform_11(%arg0: i32) -> (i32, i32) {
    %c0_i32 = arith.constant 0 : i32
    %c0_i32_0 = arith.constant 0 : i32
    return %arg0, %c0_i32 : i32, i32
  }
}

</mosaic_0001>

<llo_original>
// kernel: vae_forward.1
$region0: #{vae_forward.1}
  #allocation0 [shape = 'u32[]', space=smem, size = 0x4, offset = 0x4, fixed_abs, tag = 'smem constant byte address 0x4 - core index']
  #allocation1 [shape = 'u32[72,128]{1,0:T(1,128)}', space=vmem, size = 0x9000, scoped, tag = 'internal scratch']
  %s0 = inlined_call_operand.vmem [shape: f32[16,128], index: 0, kind: input, shape index: {}]
  %s1 = inlined_call_operand.vmem [shape: f32[16,128], index: 1, kind: input, shape index: {}]
  %s2 = inlined_call_operand.hbm [shape: bf16[128,128], index: 2, kind: input, shape index: {}]
  %s3 = inlined_call_operand.vmem [shape: f32[1,128], index: 3, kind: input, shape index: {}]
  %s4 = inlined_call_operand.hbm [shape: bf16[128,256], index: 4, kind: input, shape index: {}]
  %s5 = inlined_call_operand.vmem [shape: f32[1,256], index: 5, kind: input, shape index: {}]
  %s6 = inlined_call_operand.hbm [shape: bf16[128,128], index: 6, kind: input, shape index: {}]
  %s7 = inlined_call_operand.vmem [shape: f32[1,128], index: 7, kind: input, shape index: {}]
  %s8 = inlined_call_operand.hbm [shape: bf16[128,128], index: 8, kind: input, shape index: {}]
  %s9 = inlined_call_operand.vmem [shape: f32[1,128], index: 9, kind: input, shape index: {}]
  %s10 = inlined_call_operand.vmem [shape: f32[16,128], index: 10, kind: output, shape index: {0}]
  %s11 = inlined_call_operand.vmem [shape: f32[16,384], index: 11, kind: output, shape index: {1}]
  %12 = xla_tuple %s10, %s11
  %s13 = sld [smem:[#allocation0]]
  $region74: #{vae_forward.1} parent=0
    _
  %s15 = ssub.s32 1, %s13
  %s16 = scalar_select 0, %s15, %s13
  $region1: #{vae_forward.1} parent=0
    #allocation2 [shape = 'u8[32768]{0}', space=vmem, size = 0x8000, scoped, tag = 'input window, operand 2, single buffered']
    #allocation3 [shape = 's32[1]{0}', space=sflag, size = 0x4, scoped, tag = 'scoped memory for vae_forward.1']
    #allocation4 [shape = 'u8[65536]{0}', space=vmem, size = 0x10000, scoped, tag = 'input window, operand 4, single buffered']
    #allocation5 [shape = 's32[1]{0}', space=sflag, size = 0x4, scoped, tag = 'scoped memory for vae_forward.1']
    #allocation6 [shape = 'u8[32768]{0}', space=vmem, size = 0x8000, scoped, tag = 'input window, operand 6, single buffered']
    #allocation7 [shape = 'u8[32768]{0}', space=vmem, size = 0x8000, scoped, tag = 'input window, operand 8, single buffered']
    #allocation8 [shape = 's32[1]{0}', space=sflag, size = 0x4, scoped, tag = 'scoped memory for vae_forward.1']
    %17 = vsyncpa [#allocation3], 0
    %18 = vsyncpa [#allocation5], 0
    %19 = vsyncpa [#allocation8], 0
    // Predicated region
    $region2: #{vae_forward.1} parent=1 // pred_check
      _
    $region3: #{vae_forward.1} parent=1 // pred_check_branch
      %21 = sbr.rel (0) target = $region5
    $region4: #{vae_forward.1} parent=1 // pred_region
      _
    $region5: #{vae_forward.1} parent=1 // pred_fallthru
      _
    // Predicated region
    $region6: #{vae_forward.1} parent=1 // pred_check
      _
    $region7: #{vae_forward.1} parent=1 // pred_check_branch
      %23 = sbr.rel (0) target = $region9
    $region8: #{vae_forward.1} parent=1 // pred_region
      _
    $region9: #{vae_forward.1} parent=1 // pred_fallthru
      _
    // Predicated region
    $region10: #{vae_forward.1} parent=1 // pred_check
      _
    $region11: #{vae_forward.1} parent=1 // pred_check_branch
      %25 = sbr.rel (0) target = $region13
    $region12: #{vae_forward.1} parent=1 // pred_region
      %27 = vsyncadd [#allocation3], 0
      %s28 = sshll.u32 %s2, 4
      %s29 = int_to_ptr.hbm [resolvable:$true] %s28
      %s30 = sshll.u32 [#allocation2], 4
      %s31 = int_to_ptr.vmem [resolvable:$true] %s30
      %36 = dma.hbm_to_vmem [thread:$0]  %s29, 1024, %s31, [#allocation3], 64, 64, 4
    $region13: #{vae_forward.1} parent=1 // pred_fallthru
      _
    // Predicated region
    $region14: #{vae_forward.1} parent=1 // pred_check
      _
    $region15: #{vae_forward.1} parent=1 // pred_check_branch
      %38 = sbr.rel (0) target = $region17
    $region16: #{vae_forward.1} parent=1 // pred_region
      _
    $region17: #{vae_forward.1} parent=1 // pred_fallthru
      _
    // Predicated region
    $region18: #{vae_forward.1} parent=1 // pred_check
      _
    $region19: #{vae_forward.1} parent=1 // pred_check_branch
      %40 = sbr.rel (0) target = $region21
    $region20: #{vae_forward.1} parent=1 // pred_region
      %42 = vsyncadd [#allocation5], 0
      %s43 = sshll.u32 %s4, 4
      %s44 = int_to_ptr.hbm [resolvable:$true] %s43
      %s45 = sshll.u32 [#allocation4], 4
      %s46 = int_to_ptr.vmem [resolvable:$true] %s45
      %51 = dma.hbm_to_vmem [thread:$0]  %s44, 2048, %s46, [#allocation5], 128, 128, 8
    $region21: #{vae_forward.1} parent=1 // pred_fallthru
      _
    // Predicated region
    $region22: #{vae_forward.1} parent=1 // pred_check
      _
    $region23: #{vae_forward.1} parent=1 // pred_check_branch
      %53 = sbr.rel (0) target = $region25
    $region24: #{vae_forward.1} parent=1 // pred_region
      _
    $region25: #{vae_forward.1} parent=1 // pred_fallthru
      _
    // Predicated region
    $region26: #{vae_forward.1} parent=1 // pred_check
      _
    $region27: #{vae_forward.1} parent=1 // pred_check_branch
      %55 = sbr.rel (0) target = $region29
    $region28: #{vae_forward.1} parent=1 // pred_region
      %57 = vsyncadd [#allocation5], 0
      %s58 = sshll.u32 %s6, 4
      %s59 = int_to_ptr.hbm [resolvable:$true] %s58
      %s60 = sshll.u32 [#allocation6], 4
      %s61 = int_to_ptr.vmem [resolvable:$true] %s60
      %66 = dma.hbm_to_vmem [thread:$0]  %s59, 1024, %s61, [#allocation5], 64, 64, 4
    $region29: #{vae_forward.1} parent=1 // pred_fallthru
      _
    // Predicated region
    $region30: #{vae_forward.1} parent=1 // pred_check
      _
    $region31: #{vae_forward.1} parent=1 // pred_check_branch
      %68 = sbr.rel (0) target = $region33
    $region32: #{vae_forward.1} parent=1 // pred_region
      _
    $region33: #{vae_forward.1} parent=1 // pred_fallthru
      _
    // Predicated region
    $region34: #{vae_forward.1} parent=1 // pred_check
      _
    $region35: #{vae_forward.1} parent=1 // pred_check_branch
      %70 = sbr.rel (0) target = $region37
    $region36: #{vae_forward.1} parent=1 // pred_region
      %72 = vsyncadd [#allocation8], 0
      %s73 = sshll.u32 %s8, 4
      %s74 = int_to_ptr.hbm [resolvable:$true] %s73
      %s75 = sshll.u32 [#allocation7], 4
      %s76 = int_to_ptr.vmem [resolvable:$true] %s75
      %81 = dma.hbm_to_vmem [thread:$0]  %s74, 1024, %s76, [#allocation8], 64, 64, 4
    $region37: #{vae_forward.1} parent=1 // pred_fallthru
      _
    // Predicated region
    $region38: #{vae_forward.1} parent=1 // pred_check
      _
    $region39: #{vae_forward.1} parent=1 // pred_check_branch
      %83 = sbr.rel (0) target = $region41
    $region40: #{vae_forward.1} parent=1 // pred_region
      _
    $region41: #{vae_forward.1} parent=1 // pred_fallthru
      _
    // Predicated region
    $region42: #{vae_forward.1} parent=1 // pred_check
      _
    $region43: #{vae_forward.1} parent=1 // pred_check_branch
      %85 = sbr.rel (0) target = $region45
    $region44: #{vae_forward.1} parent=1 // pred_region
      %87 = dma.done [#allocation3], 1024
    $region45: #{vae_forward.1} parent=1 // pred_fallthru
      _
    // Predicated region
    $region46: #{vae_forward.1} parent=1 // pred_check
      _
    $region47: #{vae_forward.1} parent=1 // pred_check_branch
      %89 = sbr.rel (0) target = $region49
    $region48: #{vae_forward.1} parent=1 // pred_region
      %91 = dma.done [#allocation5], 2048
    $region49: #{vae_forward.1} parent=1 // pred_fallthru
      _
    // Predicated region
    $region50: #{vae_forward.1} parent=1 // pred_check
      _
    $region51: #{vae_forward.1} parent=1 // pred_check_branch
      %93 = sbr.rel (0) target = $region53
    $region52: #{vae_forward.1} parent=1 // pred_region
      %95 = dma.done [#allocation5], 1024
    $region53: #{vae_forward.1} parent=1 // pred_fallthru
      _
    // Predicated region
    $region54: #{vae_forward.1} parent=1 // pred_check
      _
    $region55: #{vae_forward.1} parent=1 // pred_check_branch
      %97 = sbr.rel (0) target = $region57
    $region56: #{vae_forward.1} parent=1 // pred_region
      %99 = dma.done [#allocation8], 1024
    $region57: #{vae_forward.1} parent=1 // pred_fallthru
      _
    %v100 = vld [vmem:[%s0] sm:$0xff]
    %v101 = vld [vmem:[%s0 + $0x8] sm:$0xff]
    %v102 = vpack.c.bf16 %v101, %v100
    %v103 = vld [vmem:[#allocation2] sm:$0xf]
    %v104 = vld [vmem:[#allocation2 + $0x4] sm:$0xf]
    %v105 = vld [vmem:[#allocation2 + $0x8] sm:$0xf]
    %v106 = vld [vmem:[#allocation2 + $0xc] sm:$0xf]
    %v107 = vld [vmem:[#allocation2 + $0x10] sm:$0xf]
    %v108 = vld [vmem:[#allocation2 + $0x14] sm:$0xf]
    %v109 = vld [vmem:[#allocation2 + $0x18] sm:$0xf]
    %v110 = vld [vmem:[#allocation2 + $0x1c] sm:$0xf]
    %v111 = vld [vmem:[#allocation2 + $0x20] sm:$0xf]
    %v112 = vld [vmem:[#allocation2 + $0x24] sm:$0xf]
    %v113 = vld [vmem:[#allocation2 + $0x28] sm:$0xf]
    %v114 = vld [vmem:[#allocation2 + $0x2c] sm:$0xf]
    %v115 = vld [vmem:[#allocation2 + $0x30] sm:$0xf]
    %v116 = vld [vmem:[#allocation2 + $0x34] sm:$0xf]
    %v117 = vld [vmem:[#allocation2 + $0x38] sm:$0xf]
    %v118 = vld [vmem:[#allocation2 + $0x3c] sm:$0xf]
    %v119 = vld [vmem:[%s3] sm:$0x1]
    %v121 = vperm.slane %v119, 0
    %v139 = vunpack.c.l.b16 %v103
    %v140 = vunpack.c.l.b16 %v104
    %v141 = vunpack.c.l.b16 %v105
    %v142 = vunpack.c.l.b16 %v106
    %v143 = vunpack.c.l.b16 %v107
    %v144 = vunpack.c.l.b16 %v108
    %v145 = vunpack.c.l.b16 %v109
    %v146 = vunpack.c.l.b16 %v110
    %v147 = vunpack.c.l.b16 %v111
    %v148 = vunpack.c.l.b16 %v112
    %v149 = vunpack.c.l.b16 %v113
    %v150 = vunpack.c.l.b16 %v114
    %v151 = vunpack.c.l.b16 %v115
    %v152 = vunpack.c.l.b16 %v116
    %v153 = vunpack.c.l.b16 %v117
    %v154 = vunpack.c.l.b16 %v118
    %v155 = vpack.c.b16 %v140, %v139
    %v156 = vpack.c.b16 %v142, %v141
    %v157 = vpack.c.b16 %v144, %v143
    %v158 = vpack.c.b16 %v146, %v145
    %v159 = vpack.c.b16 %v148, %v147
    %v160 = vpack.c.b16 %v150, %v149
    %v161 = vpack.c.b16 %v152, %v151
    %v162 = vpack.c.b16 %v154, %v153
    %171 = vmatpush.bf16.msra.mxu0 %v162
    %172 = vmatpush.bf16.msra.mxu0 %v161
    %173 = vmatpush.bf16.msra.mxu0 %v160
    %174 = vmatpush.bf16.msra.mxu0 %v159
    %175 = vmatpush.bf16.msra.mxu0 %v158
    %176 = vmatpush.bf16.msra.mxu0 %v157
    %177 = vmatpush.bf16.msra.mxu0 %v156
    %178 = vmatpush.bf16.msra.mxu0 %v155
    %179 = vmatmul.bf16.gmra.mxu0 %v102
    %v180 = vpop.f32.mrf.mxu0
    %v181 = vadd.f32 %v121, %v180
    %v182 = vpop.f32.mrf.mxu0
    %v183 = vadd.f32 %v121, %v182
    %184 = vdwg.mxu0
    %v185 = vmax.f32 %v181, 0.0
    %v186 = vmax.f32 %v183, 0.0
    %v187 = vpack.c.bf16 %v186, %v185
    %v188 = vld [vmem:[#allocation4] sm:$0xff]
    %v189 = vld [vmem:[#allocation4 + $0x8] sm:$0xff]
    %v190 = vld [vmem:[#allocation4 + $0x10] sm:$0xff]
    %v191 = vld [vmem:[#allocation4 + $0x18] sm:$0xff]
    %v192 = vld [vmem:[#allocation4 + $0x20] sm:$0xff]
    %v193 = vld [vmem:[#allocation4 + $0x28] sm:$0xff]
    %v194 = vld [vmem:[#allocation4 + $0x30] sm:$0xff]
    %v195 = vld [vmem:[#allocation4 + $0x38] sm:$0xff]
    %v196 = vld [vmem:[#allocation4 + $0x40] sm:$0xff]
    %v197 = vld [vmem:[#allocation4 + $0x48] sm:$0xff]
    %v198 = vld [vmem:[#allocation4 + $0x50] sm:$0xff]
    %v199 = vld [vmem:[#allocation4 + $0x58] sm:$0xff]
    %v200 = vld [vmem:[#allocation4 + $0x60] sm:$0xff]
    %v201 = vld [vmem:[#allocation4 + $0x68] sm:$0xff]
    %v202 = vld [vmem:[#allocation4 + $0x70] sm:$0xff]
    %v203 = vld [vmem:[#allocation4 + $0x78] sm:$0xff]
    %v204 = vld [vmem:[%s5] sm:$0x3]
    %v206 = vperm.slane %v204, 0
    %v207 = vperm.slane %v204, 1
    %v226 = vunpack.c.l.b16 %v188
    %v227 = vunpack.c.h.b16 %v188
    %v228 = vunpack.c.l.b16 %v189
    %v229 = vunpack.c.h.b16 %v189
    %v230 = vunpack.c.l.b16 %v190
    %v231 = vunpack.c.h.b16 %v190
    %v232 = vunpack.c.l.b16 %v191
    %v233 = vunpack.c.h.b16 %v191
    %v234 = vunpack.c.l.b16 %v192
    %v235 = vunpack.c.h.b16 %v192
    %v236 = vunpack.c.l.b16 %v193
    %v237 = vunpack.c.h.b16 %v193
    %v238 = vunpack.c.l.b16 %v194
    %v239 = vunpack.c.h.b16 %v194
    %v240 = vunpack.c.l.b16 %v195
    %v241 = vunpack.c.h.b16 %v195
    %v242 = vunpack.c.l.b16 %v196
    %v243 = vunpack.c.h.b16 %v196
    %v244 = vunpack.c.l.b16 %v197
    %v245 = vunpack.c.h.b16 %v197
    %v246 = vunpack.c.l.b16 %v198
    %v247 = vunpack.c.h.b16 %v198
    %v248 = vunpack.c.l.b16 %v199
    %v249 = vunpack.c.h.b16 %v199
    %v250 = vunpack.c.l.b16 %v200
    %v251 = vunpack.c.h.b16 %v200
    %v252 = vunpack.c.l.b16 %v201
    %v253 = vunpack.c.h.b16 %v201
    %v254 = vunpack.c.l.b16 %v202
    %v255 = vunpack.c.h.b16 %v202
    %v256 = vunpack.c.l.b16 %v203
    %v257 = vunpack.c.h.b16 %v203
    %v258 = vpack.c.b16 %v228, %v226
    %v259 = vpack.c.b16 %v229, %v227
    %v260 = vpack.c.b16 %v232, %v230
    %v261 = vpack.c.b16 %v233, %v231
    %v262 = vpack.c.b16 %v236, %v234
    %v263 = vpack.c.b16 %v237, %v235
    %v264 = vpack.c.b16 %v240, %v238
    %v265 = vpack.c.b16 %v241, %v239
    %v266 = vpack.c.b16 %v244, %v242
    %v267 = vpack.c.b16 %v245, %v243
    %v268 = vpack.c.b16 %v248, %v246
    %v269 = vpack.c.b16 %v249, %v247
    %v270 = vpack.c.b16 %v252, %v250
    %v271 = vpack.c.b16 %v253, %v251
    %v272 = vpack.c.b16 %v256, %v254
    %v273 = vpack.c.b16 %v257, %v255
    %290 = vmatpush.bf16.msra.mxu0 %v272
    %291 = vmatpush.bf16.msra.mxu0 %v270
    %292 = vmatpush.bf16.msra.mxu0 %v268
    %293 = vmatpush.bf16.msra.mxu0 %v266
    %294 = vmatpush.bf16.msra.mxu0 %v264
    %295 = vmatpush.bf16.msra.mxu0 %v262
    %296 = vmatpush.bf16.msra.mxu0 %v260
    %297 = vmatpush.bf16.msra.mxu0 %v258
    %298 = vmatmul.bf16.gmra.mxu0 %v187
    %v299 = vpop.f32.mrf.mxu0
    %v300 = vadd.f32 %v206, %v299
    %v301 = vpop.f32.mrf.mxu0
    %v302 = vadd.f32 %v206, %v301
    %303 = vdwg.mxu0
    %304 = vmatpush.bf16.msra.mxu0 %v273
    %305 = vmatpush.bf16.msra.mxu0 %v271
    %306 = vmatpush.bf16.msra.mxu0 %v269
    %307 = vmatpush.bf16.msra.mxu0 %v267
    %308 = vmatpush.bf16.msra.mxu0 %v265
    %309 = vmatpush.bf16.msra.mxu0 %v263
    %310 = vmatpush.bf16.msra.mxu0 %v261
    %311 = vmatpush.bf16.msra.mxu0 %v259
    %312 = vmatmul.bf16.gmra.mxu0 %v187
    %v313 = vpop.f32.mrf.mxu0
    %v314 = vadd.f32 %v207, %v313
    %v315 = vpop.f32.mrf.mxu0
    %v316 = vadd.f32 %v207, %v315
    %317 = vdwg.mxu0
    %v318 = vmul.f32 %v314, 0.5
    %v319 = vmul.f32 %v316, 0.5
    %v320 = vmul.f32 %v318, 1.442695
    %v321 = vpow.pop %v320
    %v322 = vmul.f32 %v319, 1.442695
    %v323 = vpow.pop %v322
    %v324 = vld [vmem:[%s1] sm:$0xff]
    %v325 = vld [vmem:[%s1 + $0x8] sm:$0xff]
    %v326 = vmul.f32 %v324, %v321
    %v327 = vmul.f32 %v325, %v323
    %v328 = vadd.f32 %v326, %v300
    %v329 = vadd.f32 %v327, %v302
    %v330 = vpack.c.bf16 %v329, %v328
    %v331 = vld [vmem:[#allocation6] sm:$0xf]
    %v332 = vld [vmem:[#allocation6 + $0x4] sm:$0xf]
    %v333 = vld [vmem:[#allocation6 + $0x8] sm:$0xf]
    %v334 = vld [vmem:[#allocation6 + $0xc] sm:$0xf]
    %v335 = vld [vmem:[#allocation6 + $0x10] sm:$0xf]
    %v336 = vld [vmem:[#allocation6 + $0x14] sm:$0xf]
    %v337 = vld [vmem:[#allocation6 + $0x18] sm:$0xf]
    %v338 = vld [vmem:[#allocation6 + $0x1c] sm:$0xf]
    %v339 = vld [vmem:[#allocation6 + $0x20] sm:$0xf]
    %v340 = vld [vmem:[#allocation6 + $0x24] sm:$0xf]
    %v341 = vld [vmem:[#allocation6 + $0x28] sm:$0xf]
    %v342 = vld [vmem:[#allocation6 + $0x2c] sm:$0xf]
    %v343 = vld [vmem:[#allocation6 + $0x30] sm:$0xf]
    %v344 = vld [vmem:[#allocation6 + $0x34] sm:$0xf]
    %v345 = vld [vmem:[#allocation6 + $0x38] sm:$0xf]
    %v346 = vld [vmem:[#allocation6 + $0x3c] sm:$0xf]
    %v347 = vld [vmem:[%s7] sm:$0x1]
    %v349 = vperm.slane %v347, 0
    %v367 = vunpack.c.l.b16 %v331
    %v368 = vunpack.c.l.b16 %v332
    %v369 = vunpack.c.l.b16 %v333
    %v370 = vunpack.c.l.b16 %v334
    %v371 = vunpack.c.l.b16 %v335
    %v372 = vunpack.c.l.b16 %v336
    %v373 = vunpack.c.l.b16 %v337
    %v374 = vunpack.c.l.b16 %v338
    %v375 = vunpack.c.l.b16 %v339
    %v376 = vunpack.c.l.b16 %v340
    %v377 = vunpack.c.l.b16 %v341
    %v378 = vunpack.c.l.b16 %v342
    %v379 = vunpack.c.l.b16 %v343
    %v380 = vunpack.c.l.b16 %v344
    %v381 = vunpack.c.l.b16 %v345
    %v382 = vunpack.c.l.b16 %v346
    %v383 = vpack.c.b16 %v368, %v367
    %v384 = vpack.c.b16 %v370, %v369
    %v385 = vpack.c.b16 %v372, %v371
    %v386 = vpack.c.b16 %v374, %v373
    %v387 = vpack.c.b16 %v376, %v375
    %v388 = vpack.c.b16 %v378, %v377
    %v389 = vpack.c.b16 %v380, %v379
    %v390 = vpack.c.b16 %v382, %v381
    %399 = vmatpush.bf16.msra.mxu0 %v390
    %400 = vmatpush.bf16.msra.mxu0 %v389
    %401 = vmatpush.bf16.msra.mxu0 %v388
    %402 = vmatpush.bf16.msra.mxu0 %v387
    %403 = vmatpush.bf16.msra.mxu0 %v386
    %404 = vmatpush.bf16.msra.mxu0 %v385
    %405 = vmatpush.bf16.msra.mxu0 %v384
    %406 = vmatpush.bf16.msra.mxu0 %v383
    %407 = vmatmul.bf16.gmra.mxu0 %v330
    %v408 = vpop.f32.mrf.mxu0
    %v409 = vadd.f32 %v349, %v408
    %v410 = vpop.f32.mrf.mxu0
    %v411 = vadd.f32 %v349, %v410
    %412 = vdwg.mxu0
    %v413 = vmax.f32 %v409, 0.0
    %v414 = vmax.f32 %v411, 0.0
    %v415 = vpack.c.bf16 %v414, %v413
    %v416 = vld [vmem:[#allocation7] sm:$0xf]
    %v417 = vld [vmem:[#allocation7 + $0x4] sm:$0xf]
    %v418 = vld [vmem:[#allocation7 + $0x8] sm:$0xf]
    %v419 = vld [vmem:[#allocation7 + $0xc] sm:$0xf]
    %v420 = vld [vmem:[#allocation7 + $0x10] sm:$0xf]
    %v421 = vld [vmem:[#allocation7 + $0x14] sm:$0xf]
    %v422 = vld [vmem:[#allocation7 + $0x18] sm:$0xf]
    %v423 = vld [vmem:[#allocation7 + $0x1c] sm:$0xf]
    %v424 = vld [vmem:[#allocation7 + $0x20] sm:$0xf]
    %v425 = vld [vmem:[#allocation7 + $0x24] sm:$0xf]
    %v426 = vld [vmem:[#allocation7 + $0x28] sm:$0xf]
    %v427 = vld [vmem:[#allocation7 + $0x2c] sm:$0xf]
    %v428 = vld [vmem:[#allocation7 + $0x30] sm:$0xf]
    %v429 = vld [vmem:[#allocation7 + $0x34] sm:$0xf]
    %v430 = vld [vmem:[#allocation7 + $0x38] sm:$0xf]
    %v431 = vld [vmem:[#allocation7 + $0x3c] sm:$0xf]
    %v432 = vld [vmem:[%s9] sm:$0x1]
    %v434 = vperm.slane %v432, 0
    %v452 = vunpack.c.l.b16 %v416
    %v453 = vunpack.c.l.b16 %v417
    %v454 = vunpack.c.l.b16 %v418
    %v455 = vunpack.c.l.b16 %v419
    %v456 = vunpack.c.l.b16 %v420
    %v457 = vunpack.c.l.b16 %v421
    %v458 = vunpack.c.l.b16 %v422
    %v459 = vunpack.c.l.b16 %v423
    %v460 = vunpack.c.l.b16 %v424
    %v461 = vunpack.c.l.b16 %v425
    %v462 = vunpack.c.l.b16 %v426
    %v463 = vunpack.c.l.b16 %v427
    %v464 = vunpack.c.l.b16 %v428
    %v465 = vunpack.c.l.b16 %v429
    %v466 = vunpack.c.l.b16 %v430
    %v467 = vunpack.c.l.b16 %v431
    %v468 = vpack.c.b16 %v453, %v452
    %v469 = vpack.c.b16 %v455, %v454
    %v470 = vpack.c.b16 %v457, %v456
    %v471 = vpack.c.b16 %v459, %v458
    %v472 = vpack.c.b16 %v461, %v460
    %v473 = vpack.c.b16 %v463, %v462
    %v474 = vpack.c.b16 %v465, %v464
    %v475 = vpack.c.b16 %v467, %v466
    %484 = vmatpush.bf16.msra.mxu0 %v475
    %485 = vmatpush.bf16.msra.mxu0 %v474
    %486 = vmatpush.bf16.msra.mxu0 %v473
    %487 = vmatpush.bf16.msra.mxu0 %v472
    %488 = vmatpush.bf16.msra.mxu0 %v471
    %489 = vmatpush.bf16.msra.mxu0 %v470
    %490 = vmatpush.bf16.msra.mxu0 %v469
    %491 = vmatpush.bf16.msra.mxu0 %v468
    %492 = vmatmul.bf16.gmra.mxu0 %v415
    %v493 = vpop.f32.mrf.mxu0
    %v494 = vadd.f32 %v434, %v493
    %v495 = vpop.f32.mrf.mxu0
    %v496 = vadd.f32 %v434, %v495
    %497 = vdwg.mxu0
    %v498 = vtanh.pop %v494
    %v499 = vtanh.pop %v496
    %500 = vst [vmem:[%s10] sm:$0xff] %v498
    %501 = vst [vmem:[%s10 + $0x8] sm:$0xff] %v499
    %502 = vst [vmem:[%s11] sm:$0xff] %v328
    %503 = vst [vmem:[%s11 + $0x18] sm:$0xff] %v329
    %504 = vst [vmem:[%s11 + $0x8] sm:$0xff] %v300
    %505 = vst [vmem:[%s11 + $0x20] sm:$0xff] %v302
    %506 = vst [vmem:[%s11 + $0x10] sm:$0xff] %v314
    %507 = vst [vmem:[%s11 + $0x28] sm:$0xff] %v316
    // Predicated region
    $region58: #{vae_forward.1} parent=1 // pred_check
      _
    $region59: #{vae_forward.1} parent=1 // pred_check_branch
      %509 = sbr.rel (0) target = $region61
    $region60: #{vae_forward.1} parent=1 // pred_region
      _
    $region61: #{vae_forward.1} parent=1 // pred_fallthru
      _
    // Predicated region
    $region62: #{vae_forward.1} parent=1 // pred_check
      _
    $region63: #{vae_forward.1} parent=1 // pred_check_branch
      %511 = sbr.rel (0) target = $region65
    $region64: #{vae_forward.1} parent=1 // pred_region
      _
    $region65: #{vae_forward.1} parent=1 // pred_fallthru
      _
    // Predicated region
    $region66: #{vae_forward.1} parent=1 // pred_check
      _
    $region67: #{vae_forward.1} parent=1 // pred_check_branch
      %513 = sbr.rel (0) target = $region69
    $region68: #{vae_forward.1} parent=1 // pred_region
      _
    $region69: #{vae_forward.1} parent=1 // pred_fallthru
      _
    // Predicated region
    $region70: #{vae_forward.1} parent=1 // pred_check
      _
    $region71: #{vae_forward.1} parent=1 // pred_check_branch
      %515 = sbr.rel (0) target = $region73
    $region72: #{vae_forward.1} parent=1 // pred_region
      _
    $region73: #{vae_forward.1} parent=1 // pred_fallthru
      _
    %516 = vsyncpa [#allocation3], 1
    %517 = vsyncpa [#allocation5], 1
    %518 = vsyncpa [#allocation8], 1

</llo_original>
